<compile_context>
chip_gen: v5e
topology: v5e:2x2
jax: 0.10.0
libtpu: 0.0.40
codegen_flags: <defaults>
</compile_context>

<pallas_src>
import jax
import jax.numpy as jnp
from jax.experimental import pallas as pl
from jax.experimental.pallas import tpu as pltpu


_LANES = 128
_FALLBACK_VMEM_CAPACITY = 64 * 1024 * 1024   # v7x-safe default (v5e/v6e have 128 MiB)
_MAX_SCOPED_VMEM = 64 * 1024 * 1024          # never ask for more scoped VMEM than this


def _copy_kernel(x_ref, o_ref):
    # Identity copy of the current block (lane-dense when the total is
    # 128-aligned; full-extent last dim otherwise).
    o_ref[...] = x_ref[...]


def _hw_info():
    """Return (vmem_capacity_bytes, tensorcores_per_chip) with safe fallbacks."""
    vmem = _FALLBACK_VMEM_CAPACITY
    cores = 1
    try:
        info = pltpu.get_tpu_info()
        vmem = int(getattr(info, "vmem_capacity_bytes", vmem) or vmem)
        for name in ("tensorcores_per_chip", "num_tensorcores",
                     "cores_per_chip", "num_cores"):
            val = getattr(info, name, None)
            if val:
                cores = int(val)
                break
    except Exception:
        pass
    if cores == 1:
        try:
            cores = int(getattr(jax.devices()[0], "num_cores", 1) or 1)
        except Exception:
            pass
    return vmem, max(1, cores)


def _pick_block_rows(rows, sublane, max_rows, num_cores):
    """Fixed block size for the (rows, 128) copy.

    Largest multiple of `sublane` <= max_rows; only shrunk (to ~rows/num_cores)
    when the chip has multiple TensorCores and the array is big enough to
    split, so single-TC chips keep the biggest block.
    """
    if rows <= sublane:
        return rows                                   # full-extent block (always legal)
    cap = max(sublane, min(rows, max_rows))
    if num_cores > 1 and rows >= num_cores * sublane:
        per_core = pl.cdiv(pl.cdiv(rows, num_cores), sublane) * sublane
        cap = min(cap, max(sublane, per_core))        # >= num_cores grid steps
    return (cap // sublane) * sublane


def flatten_pallas(x, materialize=True):
    """Equivalent of torch Flatten.forward: (N, ...) -> (N, prod(rest))."""
    n = x.shape[0]
    f = 1
    for s in x.shape[1:]:
        f *= s

    # Zero-cost metadata view, exactly like torch's .view(-1, num_features).
    x2d = jnp.reshape(x, (n, f))
    if not materialize:
        return x2d  # optimal path: no HBM traffic at all

    itemsize = jnp.dtype(x.dtype).itemsize
    sublane = {1: 32, 2: 16}.get(itemsize, 8)         # int8 / bf16 / 32-bit packing
    total = n * f

    vmem_capacity, num_cores = _hw_info()
    vmem_limit = int(min(_MAX_SCOPED_VMEM, vmem_capacity // 2))
    block_bytes = vmem_limit // 4                      # 2 arrays x 2 pipeline buffers

    cost = pl.CostEstimate(flops=0, transcendentals=0,
                           bytes_accessed=2 * total * itemsize)

    if total % _LANES == 0:
        # Lane-dense retiling of the flat buffer: (rows, 128) slabs, unmasked
        # 128-lane stores; block size independent of the batch dim.
        rows = total // _LANES
        max_rows = max(sublane, block_bytes // (_LANES * itemsize))
        block_rows = _pick_block_rows(rows, sublane, max_rows, num_cores)
        grid = (pl.cdiv(rows, block_rows),)
        flat = jnp.reshape(x2d, (rows, _LANES))        # still metadata-only
        out = pl.pallas_call(
            _copy_kernel,
            out_shape=jax.ShapeDtypeStruct((rows, _LANES), x.dtype),
            grid_spec=pltpu.PrefetchScalarGridSpec(
                num_scalar_prefetch=0,
                grid=grid,
                in_specs=[pl.BlockSpec((block_rows, _LANES), lambda i: (i, 0))],
                out_specs=pl.BlockSpec((block_rows, _LANES), lambda i: (i, 0)),
            ),
            compiler_params=pltpu.CompilerParams(
                dimension_semantics=("parallel",),
                vmem_limit_bytes=vmem_limit,
            ),
            cost_estimate=cost,
        )(flat)
        return jnp.reshape(out, (n, f))

    # Ragged total (F not a multiple of 128): tile the (N, F) view with a
    # full-extent last dim so materialize=True still returns a fresh buffer.
    row_bytes = max(1, f * itemsize)
    max_n = max(1, block_bytes // row_bytes)
    if max_n >= n:
        block_n = n                                    # full-extent block
    else:
        block_n = min(n, max(sublane, (max_n // sublane) * sublane))
    # TODO(synk): if a single sublane-group of rows ever exceeds physical VMEM
    # (enormous odd F), this path cannot be tiled further along F.
    needed = 4 * block_n * row_bytes + (1 << 20)
    vmem_limit_ragged = max(vmem_limit, min(vmem_capacity, needed))
    grid = (pl.cdiv(n, block_n),)
    out = pl.pallas_call(
        _copy_kernel,
        out_shape=jax.ShapeDtypeStruct((n, f), x.dtype),
        grid_spec=pltpu.PrefetchScalarGridSpec(
            num_scalar_prefetch=0,
            grid=grid,
            in_specs=[pl.BlockSpec((block_n, f), lambda i: (i, 0))],
            out_specs=pl.BlockSpec((block_n, f), lambda i: (i, 0)),
        ),
        compiler_params=pltpu.CompilerParams(
            dimension_semantics=("parallel",),
            vmem_limit_bytes=vmem_limit_ragged,
        ),
        cost_estimate=cost,
    )(x2d)
    return out


if __name__ == "__main__":
    key = jax.random.PRNGKey(0)
    # Small NCHW input: batch=2, channels=4, spatial=16x16 -> features = 1024
    x = jax.random.normal(key, (2, 4, 16, 16), dtype=jnp.float32)

    # Materialized Pallas copy path (runs the lane-dense kernel).
    y = jax.block_until_ready(flatten_pallas(x))
    y_ref = jnp.reshape(x, (x.shape[0], -1))
    assert y.shape == (2, 4 * 16 * 16), y.shape
    assert y.dtype == x.dtype
    assert bool(jnp.all(y == y_ref))

    # Zero-copy path (recommended default: flatten is metadata-only).
    y_view = jax.block_until_ready(flatten_pallas(x, materialize=False))
    assert y_view.shape == y_ref.shape
    assert bool(jnp.all(y_view == y_ref))

    # Ragged feature count (F = 105, total not a multiple of 128) exercises the
    # (block_n, F) full-extent-last-dim path; still a fresh materialized buffer.
    x2 = jax.random.normal(jax.random.PRNGKey(0), (2, 3, 5, 7), dtype=jnp.float32)
    y2 = jax.block_until_ready(flatten_pallas(x2))
    assert y2.shape == (2, 3 * 5 * 7), y2.shape
    assert bool(jnp.all(y2 == jnp.reshape(x2, (2, -1))))

    print("KERNEL_OK")
</pallas_src>

<mosaic_0001>
module attributes {stable_mosaic.version = 11 : i64} {
  func.func @_copy_kernel(%arg0: i32, %arg1: memref<16x128xf32, #tpu.memory_space<vmem>>, %arg2: memref<16x128xf32, #tpu.memory_space<vmem>>) attributes {dimension_semantics = [#tpu.dimension_semantics<parallel>], iteration_bounds = array<i64: 1>, scalar_prefetch = 0 : i64, scratch_operands = 0 : i64, tpu.core_type = #tpu.core_type<tc>, window_params = [{transform_indices = @transform_0, window_bounds = array<i64: 16, 128>}, {transform_indices = @transform_1, window_bounds = array<i64: 16, 128>}]} {
    %c0 = arith.constant 0 : index
    %c0_0 = arith.constant 0 : index
    %0 = vector.load %arg1[%c0, %c0_0] : memref<16x128xf32, #tpu.memory_space<vmem>>, vector<16x128xf32>
    %c0_1 = arith.constant 0 : index
    %c0_2 = arith.constant 0 : index
    %1 = vector.load %arg2[%c0_1, %c0_2] : memref<16x128xf32, #tpu.memory_space<vmem>>, vector<16x128xf32>
    tpu.vector_store %arg2[%c0_1, %c0_2], %0 {strides = array<i32>} : memref<16x128xf32, #tpu.memory_space<vmem>>, vector<16x128xf32>,
    return
  }
  func.func @transform_0(%arg0: i32) -> (i32, i32) {
    %c0_i32 = arith.constant 0 : i32
    %c0_i32_0 = arith.constant 0 : i32
    return %arg0, %c0_i32 : i32, i32
  }
  func.func @transform_1(%arg0: i32) -> (i32, i32) {
    %c0_i32 = arith.constant 0 : i32
    %c0_i32_0 = arith.constant 0 : i32
    return %arg0, %c0_i32 : i32, i32
  }
}

</mosaic_0001>

<llo_original>
// kernel: tpu_custom_call.1
$region0: #{tpu_custom_call.1}
  #allocation0 [shape = 'u32[]', space=smem, size = 0x4, offset = 0x4, fixed_abs, tag = 'smem constant byte address 0x4 - core index']
  #allocation1 [shape = 'u32[72,128]{1,0:T(1,128)}', space=vmem, size = 0x9000, scoped, tag = 'internal scratch']
  %s0 = inlined_call_operand.hbm [shape: f32[16,128], index: 0, kind: input, shape index: {}]
  %s1 = inlined_call_operand.hbm [shape: f32[16,128], index: 1, kind: output, shape index: {}]
  %s2 = sld [smem:[#allocation0]]
  $region18: #{tpu_custom_call.1} parent=0
    _
  %s4 = ssub.s32 1, %s2
  %s5 = scalar_select 0, %s4, %s2
  $region1: #{tpu_custom_call.1} parent=0
    #allocation2 [shape = 'u8[8192]{0}', space=vmem, size = 0x2000, scoped, tag = 'input window, operand 0, single buffered']
    #allocation3 [shape = 's32[1]{0}', space=sflag, size = 0x4, scoped, tag = 'scoped memory for tpu_custom_call.1']
    #allocation4 [shape = 's32[1]{0}', space=sflag, size = 0x4, scoped, tag = 'scoped memory for tpu_custom_call.1']
    #allocation5 [shape = 'u8[8192]{0}', space=vmem, size = 0x2000, scoped, tag = 'output window, operand 0, single buffered']
    %6 = vsyncpa [#allocation3], 0
    %7 = vsyncpa [#allocation4], 0
    // Predicated region
    $region2: #{tpu_custom_call.1} parent=1 // pred_check
      _
    $region3: #{tpu_custom_call.1} parent=1 // pred_check_branch
      %9 = sbr.rel (0) target = $region5
    $region4: #{tpu_custom_call.1} parent=1 // pred_region
      %11 = vsyncadd [#allocation3], 0
      %s12 = sshll.u32 %s0, 4
      %s13 = int_to_ptr.hbm [resolvable:$true] %s12
      %s14 = sshll.u32 [#allocation2], 4
      %s15 = int_to_ptr.vmem [resolvable:$true] %s14
      %20 = dma.hbm_to_vmem [thread:$0]  %s13, 256, %s15, [#allocation3], 128, 128, 8
    $region5: #{tpu_custom_call.1} parent=1 // pred_fallthru
      _
    // Predicated region
    $region6: #{tpu_custom_call.1} parent=1 // pred_check
      _
    $region7: #{tpu_custom_call.1} parent=1 // pred_check_branch
      %22 = sbr.rel (0) target = $region9
    $region8: #{tpu_custom_call.1} parent=1 // pred_region
      %24 = dma.done [#allocation3], 256
    $region9: #{tpu_custom_call.1} parent=1 // pred_fallthru
      _
    %v25 = vld [vmem:[#allocation2] sm:$0xff]
    %v26 = vld [vmem:[#allocation2 + $0x8] sm:$0xff]
    %27 = vst [vmem:[#allocation5] sm:$0xff] %v25
    %28 = vst [vmem:[#allocation5 + $0x8] sm:$0xff] %v26
    // Predicated region
    $region10: #{tpu_custom_call.1} parent=1 // pred_check
      _
    $region11: #{tpu_custom_call.1} parent=1 // pred_check_branch
      %30 = sbr.rel (0) target = $region13
    $region12: #{tpu_custom_call.1} parent=1 // pred_region
      %32 = vsyncadd [#allocation4], 0
      %s33 = sshll.u32 [#allocation5], 4
      %s34 = int_to_ptr.vmem [resolvable:$true] %s33
      %s35 = sshll.u32 %s1, 4
      %s36 = int_to_ptr.hbm [resolvable:$true] %s35
      %41 = dma.vmem_to_hbm [thread:$0]  %s34, 256, %s36, [#allocation4], 128, 128, 8
    $region13: #{tpu_custom_call.1} parent=1 // pred_fallthru
      _
    // Predicated region
    $region14: #{tpu_custom_call.1} parent=1 // pred_check
      _
    $region15: #{tpu_custom_call.1} parent=1 // pred_check_branch
      %43 = sbr.rel (0) target = $region17
    $region16: #{tpu_custom_call.1} parent=1 // pred_region
      %45 = dma.done [#allocation4], 256
    $region17: #{tpu_custom_call.1} parent=1 // pred_fallthru
      _
    %46 = vsyncpa [#allocation3], 1
    %47 = vsyncpa [#allocation4], 1

</llo_original>
